<compile_context>
chip_gen: v6e
topology: v6e:2x2x1
jax: 0.10.0
libtpu: 0.0.40
codegen_flags: <defaults>
</compile_context>

<pallas_src>
import functools

import jax
import jax.numpy as jnp
from jax.experimental import pallas as pl
from jax.experimental.pallas import tpu as pltpu

_FLAT_COLS = 512        # lane width for the flattened (lane-dense) path
_SLAB_BYTES = 1 << 20   # f32 bytes per in-kernel row slab (strip-mining)


def _round_up(x, m):
    return (x + m - 1) // m * m


def _sublane_align(itemsize):
    return {4: 8, 2: 16, 1: 32}.get(itemsize, 8)


def _vmem_capacity_bytes():
    try:
        info = pltpu.get_tpu_info()
        cap = getattr(info, "vmem_capacity_bytes", None)
        if cap:
            return int(cap)
    except Exception:
        pass
    return 64 << 20     # conservative (v7x-sized) fallback


def _tensorcores_per_chip():
    """Conservative detection: return 2 only if positively confirmed (v7x)."""
    try:
        info = pltpu.get_tpu_info()
    except Exception:
        return 1
    for name in ("tensorcores_per_chip", "num_tensorcores", "tensorcore_count",
                 "num_cores_per_chip"):
        if getattr(info, name, None) == 2:
            return 2
    return 1            # unknown -> assume single TensorCore (v5e / v6e)


def _pick_tiling(rows, cols, itemsize, align, per_tile_bytes):
    """Return (block_rows, slab_rows): DMA-tile rows and in-kernel strip rows."""
    rows_al = _round_up(max(rows, 1), align)
    slab_rows = (_SLAB_BYTES // (cols * 4)) // align * align
    slab_rows = max(align, min(slab_rows, rows_al))
    budget_rows = (per_tile_bytes // (cols * itemsize)) // slab_rows * slab_rows
    block_rows = max(slab_rows, min(budget_rows, _round_up(rows_al, slab_rows)))
    return block_rows, slab_rows


def _slab_for_block(block_rows, cols, align):
    """Largest multiple-of-align divisor of block_rows within the slab budget."""
    target = max(align, (_SLAB_BYTES // (cols * 4)) // align * align)
    best, d = align, align
    while d <= min(block_rows, target):
        if block_rows % d == 0:
            best = d
        d += align
    return best


def _margin_ranking_kernel(pos_ref, neg_ref, out_ref, *, margin, num_rows,
                           slab_rows):
    """Accumulate per-(sublane, lane) partial hinge sums into out_ref."""
    c = pl.program_id(0)                  # chunk (TensorCore) axis
    s = pl.program_id(1)                  # reduction step within the chunk
    block_rows, cols = pos_ref.shape
    num_slabs = block_rows // slab_rows

    @pl.when(s == 0)
    def _init():
        out_ref[...] = jnp.zeros_like(out_ref)

    # Unclamped absolute row index of this tile's first row (the index_map may
    # have clamped a duplicate trailing block; it is fully masked below).
    row_start = (c * pl.num_programs(1) + s) * block_rows

    def slab_body(i, carry):
        r0 = pl.multiple_of(i * slab_rows, slab_rows)
        # In-kernel upcast keeps the HBM stream in the input dtype (bf16 stays
        # bf16 on the wire); f32 math preserves reference numerics.
        p = pos_ref[pl.ds(r0, slab_rows), :].astype(jnp.float32)
        n = neg_ref[pl.ds(r0, slab_rows), :].astype(jnp.float32)
        hinge = jnp.maximum(jnp.float32(margin) - p + n, 0.0)

        slab_start = row_start + r0
        tail = slab_start + slab_rows > num_rows   # partial / duplicate slab?

        @pl.when(tail)
        def _masked():                      # only the tail slab pays for this
            rid = jax.lax.broadcasted_iota(jnp.int32, (slab_rows, 1), 0) + slab_start
            h = jnp.where(rid < num_rows, hinge, 0.0)
            out_ref[0] += h.reshape(slab_rows // 8, 8, cols).sum(axis=0)

        @pl.when(jnp.logical_not(tail))
        def _full():                        # interior slabs: no masking ops
            out_ref[0] += hinge.reshape(slab_rows // 8, 8, cols).sum(axis=0)

        return carry

    jax.lax.fori_loop(0, num_slabs, slab_body, 0, unroll=num_slabs <= 8)


def margin_ranking_loss(positive_similarity: jax.Array,
                        negative_similarity: jax.Array,
                        margin: float = 1.0,
                        *,
                        num_chunks: int | None = None,
                        block_rows: int | None = None) -> jax.Array:
    """Pallas TPU implementation of MarginRankingLoss (aggregate = mean)."""
    pos, neg = positive_similarity, negative_similarity
    assert pos.shape == neg.shape, "similarity tensors must have the same shape"
    total = int(pos.size)
    assert total > 0, "empty input"

    # TPU-friendly floating dtypes only; anything else is computed in f32.
    if pos.dtype != neg.dtype or pos.dtype not in (jnp.float32, jnp.bfloat16,
                                                   jnp.float16):
        pos = pos.astype(jnp.float32)
        neg = neg.astype(jnp.float32)
    itemsize = jnp.dtype(pos.dtype).itemsize
    align = _sublane_align(itemsize)

    # Generation-aware VMEM budget (bigger tiles on 128 MiB v5e/v6e, tighter on
    # 64 MiB v7x; strip-mining bounds the f32 temporaries either way).
    vmem_limit = min(96 << 20, max(32 << 20, _vmem_capacity_bytes() // 2))
    per_tile_bytes = min(8 << 20, max(1 << 20, vmem_limit // 6))

    # ---- choose a lane-dense 2-D view -------------------------------------
    cols = pos.shape[-1] if pos.ndim >= 2 else 0
    native_ok = (
        pos.ndim >= 2
        and cols >= 128 and cols % 128 == 0
        and align * cols * itemsize <= per_tile_bytes   # >= 1 row-group per tile
        and align * cols * 4 <= 2 * _SLAB_BYTES         # bounded f32 slab temps
    )
    if native_ok:
        pos2 = pos.reshape(-1, cols)
        neg2 = neg.reshape(-1, cols)
        logical_rows = pos2.shape[0]
    else:
        # Flatten to (rows, 512): full 128-lane vregs/DMAs regardless of the
        # original trailing dim.  Pad (< 512 elems) with neutral values so the
        # padded hinge is exactly 0 -> no per-element masking needed.
        cols = _FLAT_COLS
        logical_rows = pl.cdiv(total, cols)
        pad = logical_rows * cols - total
        flat_p = pos.reshape(-1)
        flat_n = neg.reshape(-1)
        if pad:
            flat_p = jnp.concatenate(
                [flat_p, jnp.full((pad,), jnp.finfo(pos.dtype).max, pos.dtype)])
            flat_n = jnp.concatenate([flat_n, jnp.zeros((pad,), neg.dtype)])
        pos2 = flat_p.reshape(logical_rows, cols)
        neg2 = flat_n.reshape(logical_rows, cols)

    # ---- tiling ------------------------------------------------------------
    if block_rows is None:
        block_rows, slab_rows = _pick_tiling(logical_rows, cols, itemsize,
                                             align, per_tile_bytes)
    else:
        assert block_rows % align == 0, f"block_rows must be a multiple of {align}"
        slab_rows = _slab_for_block(block_rows, cols, align)

    row_blocks = pl.cdiv(logical_rows, block_rows)

    # One chunk per TensorCore: 1 on v5e/v6e (no wasted duplicate-block DMA),
    # 2 on v7x (explicit num_chunks=2 or positive detection) for a real 2-TC
    # split of this purely streaming kernel.
    if num_chunks is None:
        num_chunks = _tensorcores_per_chip()
    num_chunks = max(1, min(int(num_chunks), row_blocks))
    steps = pl.cdiv(row_blocks, num_chunks)

    def in_map(c, s):
        # Clamp so a chunk's trailing out-of-range step re-reads the last valid
        # block; its contribution is masked to zero in the kernel.
        return (jnp.minimum(c * steps + s, row_blocks - 1), 0)

    kernel = functools.partial(_margin_ranking_kernel, margin=float(margin),
                               num_rows=logical_rows, slab_rows=slab_rows)

    if num_chunks > 1:
        dims = (pltpu.CORE_PARALLEL, pltpu.ARBITRARY)   # real 2-TC split (v7x)
    else:
        dims = ("arbitrary", "arbitrary")

    partials = pl.pallas_call(
        kernel,
        out_shape=jax.ShapeDtypeStruct((num_chunks, 8, cols), jnp.float32),
        grid_spec=pltpu.PrefetchScalarGridSpec(
            num_scalar_prefetch=0,
            grid=(num_chunks, steps),
            in_specs=[
                pl.BlockSpec((block_rows, cols), in_map),
                pl.BlockSpec((block_rows, cols), in_map),
            ],
            out_specs=pl.BlockSpec((1, 8, cols), lambda c, s: (c, 0, 0)),
        ),
        compiler_params=pltpu.CompilerParams(
            dimension_semantics=dims,
            vmem_limit_bytes=vmem_limit,
        ),
        cost_estimate=pl.CostEstimate(
            flops=3 * total,
            transcendentals=0,
            bytes_accessed=2 * pos2.size * itemsize + num_chunks * 8 * cols * 4,
        ),
    )(pos2, neg2)

    # Tiny cross-lane reduction + mean in plain JAX (divisor = true count).
    return jnp.sum(partials) / jnp.float32(total)


def _reference(pos, neg, margin):
    pos = pos.astype(jnp.float32)
    neg = neg.astype(jnp.float32)
    return jnp.mean(jnp.maximum(jnp.float32(margin) - pos + neg, 0.0))


if __name__ == "__main__":
    key = jax.random.PRNGKey(0)
    ks = jax.random.split(key, 8)

    # 1) Lane-aligned f32 (native-layout path): 16 samples x 128 similarities.
    pos = jax.random.normal(ks[0], (16, 128), dtype=jnp.float32)
    neg = jax.random.normal(ks[1], (16, 128), dtype=jnp.float32)
    out = jax.block_until_ready(margin_ranking_loss(pos, neg, margin=1.0))
    ref = _reference(pos, neg, 1.0)
    assert jnp.allclose(out, ref, rtol=1e-6, atol=1e-6), (out, ref)

    # 2) Multi-block native path with a masked partial tail block.
    pos = jax.random.normal(ks[2], (37, 128), dtype=jnp.float32)
    neg = jax.random.normal(ks[3], (37, 128), dtype=jnp.float32)
    out = jax.block_until_ready(
        margin_ranking_loss(pos, neg, margin=0.5, block_rows=8))
    ref = _reference(pos, neg, 0.5)
    assert jnp.allclose(out, ref, rtol=1e-6, atol=1e-6), (out, ref)

    # 3) bf16 with unaligned trailing dim -> flattened lane-dense path
    #    (neutral-value padding, in-kernel upcast, 16-row sublane alignment).
    pos = jax.random.normal(ks[4], (20, 96), dtype=jnp.bfloat16)
    neg = jax.random.normal(ks[5], (20, 96), dtype=jnp.bfloat16)
    out = jax.block_until_ready(margin_ranking_loss(pos, neg, margin=1.0))
    ref = _reference(pos, neg, 1.0)
    assert jnp.allclose(out, ref, rtol=2e-2, atol=2e-2), (out, ref)

    # 4) 1-D similarity vectors (typical StarSpace usage) -> flattened path.
    pos = jax.random.normal(ks[6], (300,), dtype=jnp.float32)
    neg = jax.random.normal(ks[7], (300,), dtype=jnp.float32)
    out = jax.block_until_ready(margin_ranking_loss(pos, neg, margin=1.0))
    ref = _reference(pos, neg, 1.0)
    assert jnp.allclose(out, ref, rtol=1e-6, atol=1e-6), (out, ref)

    print("KERNEL_OK")
</pallas_src>

<mosaic_0001>
module attributes {stable_mosaic.version = 11 : i64} {
  func.func @_margin_ranking_kernel(%arg0: i32, %arg1: i32, %arg2: memref<16x128xf32, #tpu.memory_space<vmem>>, %arg3: memref<16x128xf32, #tpu.memory_space<vmem>>, %arg4: memref<1x8x128xf32, #tpu.memory_space<vmem>>) attributes {dimension_semantics = [#tpu.dimension_semantics<arbitrary>, #tpu.dimension_semantics<arbitrary>], iteration_bounds = array<i64: 1, 1>, scalar_prefetch = 0 : i64, scratch_operands = 0 : i64, tpu.core_type = #tpu.core_type<tc>, window_params = [{transform_indices = @transform_0, window_bounds = array<i64: 16, 128>}, {transform_indices = @transform_1, window_bounds = array<i64: 16, 128>}, {transform_indices = @transform_2, window_bounds = array<i64: 1, 8, 128>}]} {
    %c0_i32 = arith.constant 0 : i32
    %0 = arith.cmpi eq, %arg1, %c0_i32 : i32
    %1 = arith.extui %0 : i1 to i32
    %c0_i32_0 = arith.constant 0 : i32
    %2 = arith.cmpi ne, %1, %c0_i32_0 : i32
    scf.if %2 {
      %cst_10 = arith.constant 0.000000e+00 : f32
      %25 = vector.broadcast %cst_10 : f32 to vector<1x8x128xf32>
      %c0_11 = arith.constant 0 : index
      %c0_12 = arith.constant 0 : index
      %c0_13 = arith.constant 0 : index
      %26 = vector.load %arg4[%c0_11, %c0_12, %c0_13] : memref<1x8x128xf32, #tpu.memory_space<vmem>>, vector<1x8x128xf32>
      tpu.vector_store %arg4[%c0_11, %c0_12, %c0_13], %25 {strides = array<i32>} : memref<1x8x128xf32, #tpu.memory_space<vmem>>, vector<1x8x128xf32>,
    } else {
    }
    %c1_i32 = arith.constant 1 : i32
    %3 = arith.muli %arg0, %c1_i32 : i32
    %4 = arith.addi %3, %arg1 : i32
    %c16_i32 = arith.constant 16 : i32
    %5 = arith.muli %4, %c16_i32 : i32
    %c0_i32_1 = arith.constant 0 : i32
    %c16_i32_2 = arith.constant 16 : i32
    %6 = arith.muli %c0_i32_1, %c16_i32_2 : i32
    %7 = tpu.assume_multiple %6, 16 : i32
    %8 = arith.index_cast %7 : i32 to index
    %c0 = arith.constant 0 : index
    %9 = vector.load %arg2[%8, %c0] : memref<16x128xf32, #tpu.memory_space<vmem>>, vector<16x128xf32>
    %10 = arith.index_cast %7 : i32 to index
    %c0_3 = arith.constant 0 : index
    %11 = vector.load %arg3[%10, %c0_3] : memref<16x128xf32, #tpu.memory_space<vmem>>, vector<16x128xf32>
    %cst = arith.constant 1.000000e+00 : f32
    %12 = vector.broadcast %cst : f32 to vector<16x128xf32>
    %13 = arith.subf %12, %9 : vector<16x128xf32>
    %14 = arith.addf %13, %11 : vector<16x128xf32>
    %cst_4 = arith.constant 0.000000e+00 : f32
    %15 = vector.broadcast %cst_4 : f32 to vector<16x128xf32>
    %16 = arith.maximumf %14, %15 : vector<16x128xf32>
    %17 = arith.addi %5, %7 : i32
    %c16_i32_5 = arith.constant 16 : i32
    %18 = arith.addi %17, %c16_i32_5 : i32
    %c16_i32_6 = arith.constant 16 : i32
    %19 = arith.cmpi sgt, %18, %c16_i32_6 : i32
    %20 = arith.extui %19 : i1 to i32
    %c0_i32_7 = arith.constant 0 : i32
    %21 = arith.cmpi ne, %20, %c0_i32_7 : i32
    scf.if %21 {
      %25 = tpu.iota {dimensions = array<i32: 0>} : vector<16x1xi32>
      %26 = vector.broadcast %17 : i32 to vector<16x1xi32>
      %27 = arith.addi %25, %26 : vector<16x1xi32>
      %c16_i32_10 = arith.constant 16 : i32
      %28 = vector.broadcast %c16_i32_10 : i32 to vector<16x1xi32>
      %29 = arith.cmpi slt, %27, %28 : vector<16x1xi32>
      %cst_11 = arith.constant 0.000000e+00 : f32
      %30 = vector.shape_cast %29 : vector<16x1xi1> to vector<16x1xi1>
      %31 = vector.broadcast %30 : vector<16x1xi1> to vector<16x128xi1>
      %32 = vector.broadcast %cst_11 : f32 to vector<16x128xf32>
      %33 = arith.select %31, %16, %32 : vector<16x128xi1>, vector<16x128xf32>
      %c0_12 = arith.constant 0 : index
      %c0_13 = arith.constant 0 : index
      %c0_14 = arith.constant 0 : index
      %34 = vector.load %arg4[%c0_12, %c0_13, %c0_14] : memref<1x8x128xf32, #tpu.memory_space<vmem>>, vector<1x8x128xf32>
      %35 = vector.shape_cast %34 : vector<1x8x128xf32> to vector<8x128xf32>
      %36 = vector.shape_cast %33 : vector<16x128xf32> to vector<2x8x128xf32>
      %cst_15 = arith.constant dense<0.000000e+00> : vector<8x128xf32>
      %37 = vector.multi_reduction <add>, %36, %cst_15 [0] : vector<2x8x128xf32> to vector<8x128xf32>
      %38 = arith.addf %35, %37 : vector<8x128xf32>
      %c0_16 = arith.constant 0 : index
      %c0_17 = arith.constant 0 : index
      %c0_18 = arith.constant 0 : index
      %39 = vector.load %arg4[%c0_16, %c0_17, %c0_18] : memref<1x8x128xf32, #tpu.memory_space<vmem>>, vector<1x8x128xf32>
      %40 = vector.shape_cast %39 : vector<1x8x128xf32> to vector<8x128xf32>
      %41 = vector.shape_cast %38 : vector<8x128xf32> to vector<1x8x128xf32>
      tpu.vector_store %arg4[%c0_16, %c0_17, %c0_18], %41 {strides = array<i32>} : memref<1x8x128xf32, #tpu.memory_space<vmem>>, vector<1x8x128xf32>,
    } else {
    }
    %true = arith.constant true
    %22 = arith.xori %19, %true : i1
    %23 = arith.extui %22 : i1 to i32
    %c0_i32_8 = arith.constant 0 : i32
    %24 = arith.cmpi ne, %23, %c0_i32_8 : i32
    scf.if %24 {
      %c0_10 = arith.constant 0 : index
      %c0_11 = arith.constant 0 : index
      %c0_12 = arith.constant 0 : index
      %25 = vector.load %arg4[%c0_10, %c0_11, %c0_12] : memref<1x8x128xf32, #tpu.memory_space<vmem>>, vector<1x8x128xf32>
      %26 = vector.shape_cast %25 : vector<1x8x128xf32> to vector<8x128xf32>
      %27 = vector.shape_cast %16 : vector<16x128xf32> to vector<2x8x128xf32>
      %cst_13 = arith.constant dense<0.000000e+00> : vector<8x128xf32>
      %28 = vector.multi_reduction <add>, %27, %cst_13 [0] : vector<2x8x128xf32> to vector<8x128xf32>
      %29 = arith.addf %26, %28 : vector<8x128xf32>
      %c0_14 = arith.constant 0 : index
      %c0_15 = arith.constant 0 : index
      %c0_16 = arith.constant 0 : index
      %30 = vector.load %arg4[%c0_14, %c0_15, %c0_16] : memref<1x8x128xf32, #tpu.memory_space<vmem>>, vector<1x8x128xf32>
      %31 = vector.shape_cast %30 : vector<1x8x128xf32> to vector<8x128xf32>
      %32 = vector.shape_cast %29 : vector<8x128xf32> to vector<1x8x128xf32>
      tpu.vector_store %arg4[%c0_14, %c0_15, %c0_16], %32 {strides = array<i32>} : memref<1x8x128xf32, #tpu.memory_space<vmem>>, vector<1x8x128xf32>,
    } else {
    }
    %c1_i32_9 = arith.constant 1 : i32
    return
  }
  func.func @transform_0(%arg0: i32, %arg1: i32) -> (i32, i32) {
    %c1_i32 = arith.constant 1 : i32
    %0 = arith.muli %arg0, %c1_i32 : i32
    %1 = arith.addi %0, %arg1 : i32
    %c0_i32 = arith.constant 0 : i32
    %2 = arith.minsi %1, %c0_i32 : i32
    %c0_i32_0 = arith.constant 0 : i32
    %c0_i32_1 = arith.constant 0 : i32
    return %2, %c0_i32_0 : i32, i32
  }
  func.func @transform_1(%arg0: i32, %arg1: i32) -> (i32, i32) {
    %c1_i32 = arith.constant 1 : i32
    %0 = arith.muli %arg0, %c1_i32 : i32
    %1 = arith.addi %0, %arg1 : i32
    %c0_i32 = arith.constant 0 : i32
    %2 = arith.minsi %1, %c0_i32 : i32
    %c0_i32_0 = arith.constant 0 : i32
    %c0_i32_1 = arith.constant 0 : i32
    return %2, %c0_i32_0 : i32, i32
  }
  func.func @transform_2(%arg0: i32, %arg1: i32) -> (i32, i32, i32) {
    %c0_i32 = arith.constant 0 : i32
    %c0_i32_0 = arith.constant 0 : i32
    %c0_i32_1 = arith.constant 0 : i32
    return %arg0, %c0_i32, %c0_i32_0 : i32, i32, i32
  }
}

</mosaic_0001>

<llo_original>
// kernel: tpu_custom_call.1
$region0: #{tpu_custom_call.1}
  #allocation0 [shape = 'u32[]', space=smem, size = 0x4, offset = 0x4, fixed_abs, tag = 'smem constant byte address 0x4 - core index']
  #allocation1 [shape = 'u32[144,128]{1,0:T(1,128)}', space=vmem, size = 0x12000, scoped, tag = 'internal scratch']
  %s0 = inlined_call_operand.hbm [shape: f32[16,128], index: 0, kind: input, shape index: {}]
  %s1 = inlined_call_operand.hbm [shape: f32[16,128], index: 1, kind: input, shape index: {}]
  %s2 = inlined_call_operand.hbm [shape: f32[1,8,128], index: 2, kind: output, shape index: {}]
  %s3 = sld [smem:[#allocation0]]
  $region38: #{tpu_custom_call.1} parent=0
    _
  %s5 = ssub.s32 1, %s3
  %s6 = scalar_select 0, %s5, %s3
  $region1: #{tpu_custom_call.1} parent=0
    #allocation2 [shape = 'u8[8192]{0}', space=vmem, size = 0x2000, scoped, tag = 'input window, operand 0, single buffered']
    #allocation3 [shape = 's32[1]{0}', space=sflag, size = 0x4, scoped, tag = 'scoped memory for tpu_custom_call.1']
    #allocation4 [shape = 's32[1]{0}', space=sflag, size = 0x4, scoped, tag = 'scoped memory for tpu_custom_call.1']
    #allocation5 [shape = 'u8[8192]{0}', space=vmem, size = 0x2000, scoped, tag = 'input window, operand 1, single buffered']
    #allocation6 [shape = 's32[1]{0}', space=sflag, size = 0x4, scoped, tag = 'scoped memory for tpu_custom_call.1']
    #allocation7 [shape = 'u8[4096]{0}', space=vmem, size = 0x1000, scoped, tag = 'output window, operand 0, single buffered']
    %7 = vsyncpa [#allocation3], 0
    %8 = vsyncpa [#allocation6], 0
    %9 = vsyncpa [#allocation4], 0
    // Predicated region
    $region2: #{tpu_custom_call.1} parent=1 // pred_check
      _
    $region3: #{tpu_custom_call.1} parent=1 // pred_check_branch
      %11 = sbr.rel (0) target = $region5
    $region4: #{tpu_custom_call.1} parent=1 // pred_region
      %s12 = sadd.s32 0, 0
      %p13 = scmp.lt.s32.totalorder %s12, 0
      %s14 = scalar_select %p13, %s12, 0
      %s15 = smul.u32 2, %s14
      %s17 = ssub.s32 256, 256
      %18 = vsyncadd [#allocation3], %s17
      %s19 = smul.addr %s15, 128
      %s20 = scalar_lea.hbm %s0, %s19
      %s21 = sshll.u32 [#allocation2], 4
      %s22 = int_to_ptr.vmem [resolvable:$true] %s21
      %27 = dma.hbm_to_vmem [thread:$0]  %s20, 256, %s22, [#allocation3], 128, 128, 8
    $region5: #{tpu_custom_call.1} parent=1 // pred_fallthru
      _
    // Predicated region
    $region6: #{tpu_custom_call.1} parent=1 // pred_check
      _
    $region7: #{tpu_custom_call.1} parent=1 // pred_check_branch
      %29 = sbr.rel (0) target = $region9
    $region8: #{tpu_custom_call.1} parent=1 // pred_region
      %s30 = sadd.s32 0, 0
      %p31 = scmp.lt.s32.totalorder %s30, 0
      %s32 = scalar_select %p31, %s30, 0
      %s33 = smul.u32 2, %s32
      %s35 = ssub.s32 256, 256
      %36 = vsyncadd [#allocation6], %s35
      %s37 = smul.addr %s33, 128
      %s38 = scalar_lea.hbm %s1, %s37
      %s39 = sshll.u32 [#allocation5], 4
      %s40 = int_to_ptr.vmem [resolvable:$true] %s39
      %45 = dma.hbm_to_vmem [thread:$0]  %s38, 256, %s40, [#allocation6], 128, 128, 8
    $region9: #{tpu_custom_call.1} parent=1 // pred_fallthru
      _
    // Predicated region
    $region10: #{tpu_custom_call.1} parent=1 // pred_check
      _
    $region11: #{tpu_custom_call.1} parent=1 // pred_check_branch
      %47 = sbr.rel (0) target = $region13
    $region12: #{tpu_custom_call.1} parent=1 // pred_region
      %48 = dma.done [#allocation3], 256
    $region13: #{tpu_custom_call.1} parent=1 // pred_fallthru
      _
    // Predicated region
    $region14: #{tpu_custom_call.1} parent=1 // pred_check
      _
    $region15: #{tpu_custom_call.1} parent=1 // pred_check_branch
      %50 = sbr.rel (0) target = $region17
    $region16: #{tpu_custom_call.1} parent=1 // pred_region
      %51 = dma.done [#allocation6], 256
    $region17: #{tpu_custom_call.1} parent=1 // pred_fallthru
      _
    %s52 = sadd.s32 0, 0
    %p53 = scmp.lt.s32.totalorder %s52, 0
    %s54 = scalar_select %p53, %s52, 0
    %s55 = smul.u32 2, %s54
    %s56 = sadd.s32 0, 0
    %p57 = scmp.lt.s32.totalorder %s56, 0
    %s58 = scalar_select %p57, %s56, 0
    %s59 = smul.u32 2, %s58
    %p60 = scmp.eq.s32.totalorder 0, 0
    // Predicated region
    $region18: #{tpu_custom_call.1} parent=1 // pred_check
      %p61 = pneg %p60
    $region19: #{tpu_custom_call.1} parent=1 // pred_check_branch
      %63 = sbr.rel (%p61) target = $region21
    $region20: #{tpu_custom_call.1} parent=1 // pred_region
      %64 = vst [vmem:[#allocation7] sm:$0xff] 0.0
    $region21: #{tpu_custom_call.1} parent=1 // pred_fallthru
      _
    %s65 = sadd.s32 0, 0
    %s66 = smul.u32 %s65, 16
    %v67 = vld [vmem:[#allocation2] sm:$0xff]
    %v68 = vld [vmem:[#allocation2 + $0x8] sm:$0xff]
    %v69 = vld [vmem:[#allocation5] sm:$0xff]
    %v70 = vld [vmem:[#allocation5 + $0x8] sm:$0xff]
    %v71 = vsub.f32 1.0, %v67
    %v72 = vsub.f32 1.0, %v68
    %v73 = vadd.f32 %v71, %v69
    %v74 = vadd.f32 %v72, %v70
    %v75 = vmax.f32 %v73, 0.0
    %v76 = vmax.f32 %v74, 0.0
    %s77 = sadd.s32 %s66, 0
    %s78 = sadd.s32 %s77, 16
    %p79 = scmp.gt.s32.totalorder %s78, 16
    // Predicated region
    $region22: #{tpu_custom_call.1} parent=1 // pred_check
      %p80 = pneg %p79
    $region23: #{tpu_custom_call.1} parent=1 // pred_check_branch
      %82 = sbr.rel (%p80) target = $region25
    $region24: #{tpu_custom_call.1} parent=1 // pred_region
      %v83 = vlaneseq
      %v84 = vshrl.u32 %v83, 7
      %v85 = vadd.s32 %v84, 8
      %v86 = vstv %s77
      %v87 = vadd.s32 %v84, %v86
      %v88 = vadd.s32 %v85, %v86
      %vm89 = vcmp.lt.s32.totalorder %v87, 16
      %vm90 = vcmp.lt.s32.totalorder %v88, 16
      %v91 = vsel %vm89, 1, 0
      %v92 = vsel %vm90, 1, 0
      %vm93 = vcmp.eq.s32.totalorder %v91, 1
      %vm94 = vcmp.eq.s32.totalorder %v92, 1
      %v95 = vsel %vm93, %v75, 0.0
      %v96 = vsel %vm94, %v76, 0.0
      %v97 = vld [vmem:[#allocation7] sm:$0xff]
      %v98 = vadd.f32 %v95, %v96
      %v99 = vadd.f32 %v97, %v98
      %100 = vst [vmem:[#allocation7] sm:$0xff] %v99
    $region25: #{tpu_custom_call.1} parent=1 // pred_fallthru
      _
    %p101 = scmp.le.s32.totalorder %s78, 16
    // Predicated region
    $region26: #{tpu_custom_call.1} parent=1 // pred_check
      %p102 = pneg %p101
    $region27: #{tpu_custom_call.1} parent=1 // pred_check_branch
      %104 = sbr.rel (%p102) target = $region29
    $region28: #{tpu_custom_call.1} parent=1 // pred_region
      %v105 = vld [vmem:[#allocation7] sm:$0xff]
      %v106 = vadd.f32 %v75, %v76
      %v107 = vadd.f32 %v105, %v106
      %108 = vst [vmem:[#allocation7] sm:$0xff] %v107
    $region29: #{tpu_custom_call.1} parent=1 // pred_fallthru
      _
    // Predicated region
    $region30: #{tpu_custom_call.1} parent=1 // pred_check
      _
    $region31: #{tpu_custom_call.1} parent=1 // pred_check_branch
      %110 = sbr.rel (0) target = $region33
    $region32: #{tpu_custom_call.1} parent=1 // pred_region
      %s112 = ssub.s32 128, 128
      %113 = vsyncadd [#allocation4], %s112
      %s115 = sshll.u32 [#allocation7], 4
      %s116 = int_to_ptr.vmem [resolvable:$true] %s115
      %118 = dma.vmem_to_hbm [thread:$0]  %s116, 128, %s2, [#allocation4]
    $region33: #{tpu_custom_call.1} parent=1 // pred_fallthru
      _
    // Predicated region
    $region34: #{tpu_custom_call.1} parent=1 // pred_check
      _
    $region35: #{tpu_custom_call.1} parent=1 // pred_check_branch
      %120 = sbr.rel (0) target = $region37
    $region36: #{tpu_custom_call.1} parent=1 // pred_region
      %121 = dma.done [#allocation4], 128
    $region37: #{tpu_custom_call.1} parent=1 // pred_fallthru
      _
    %122 = vsyncpa [#allocation3], 1
    %123 = vsyncpa [#allocation6], 1
    %124 = vsyncpa [#allocation4], 1

</llo_original>
